<compile_context>
chip_gen: v7x
topology: tpu7x:2x2x1
jax: 0.10.0
libtpu: 0.0.40
codegen_flags: <defaults>
</compile_context>

<pallas_src>
import jax
import jax.numpy as jnp
from jax.experimental import pallas as pl
from jax.experimental.pallas import tpu as pltpu


def make_kernel(num_conv_layers, num_joints, eps=1e-5):
    del num_joints  # pooling handled by the block-diagonal segment matrix

    def ln_relu(h):
        # CustomLayerNorm over the channel (lane) dim; torch.var is unbiased.
        c = h.shape[-1]
        mean = jnp.mean(h, axis=-1, keepdims=True)
        d = h - mean
        var = jnp.sum(d * d, axis=-1, keepdims=True) * (1.0 / (c - 1))
        return jnp.maximum(d * jax.lax.rsqrt(var + eps), 0.0)

    def kernel(x_ref, m_ref, seg_ref, *rest):
        out_ref = rest[-1]
        params = rest[:-1]  # [w0x, w0m, b0, (w_i, b_i)*, w_latent, b_latent]

        m_flat = m_ref[...]  # (Bt*T, 1) f32, values in {0, 1}

        # --- conv layer 0: mask channel folded in as a rank-1 update -------
        h = jnp.dot(x_ref[...], params[0][...],          # bf16 @ bf16 -> f32
                    preferred_element_type=jnp.float32)
        h = h + m_flat * params[1][...] + params[2][...]
        h = ln_relu(h)

        # --- remaining [Conv1d(k=1) -> LayerNorm -> ReLU] layers -----------
        idx = 3
        for _ in range(1, num_conv_layers):
            w = params[idx][...]
            b = params[idx + 1][...]
            idx += 2
            h = jnp.dot(h.astype(jnp.bfloat16), w,
                        preferred_element_type=jnp.float32) + b
            h = ln_relu(h)

        # --- masked per-joint mean pooling as block-diagonal MXU matmul ----
        seg = seg_ref[...]                                    # (Bt*J, Bt*T) f32
        pooled = jnp.dot(seg, h * m_flat,
                         preferred_element_type=jnp.float32)   # (Bt*J, C)
        local_sum = jnp.dot(seg, m_flat,
                            preferred_element_type=jnp.float32)  # (Bt*J, 1)
        zero = local_sum == 0.0
        inv = pl.reciprocal(jnp.where(zero, 1.0, local_sum) + 1e-6, approx=True)
        pooled = jnp.where(zero, 0.0, pooled * inv)

        # --- latent 1x1 conv (output lanes zero-padded to x128) ------------
        wl = params[idx][...]
        bl = params[idx + 1][...]
        y = jnp.dot(pooled.astype(jnp.bfloat16), wl,
                    preferred_element_type=jnp.float32) + bl    # (Bt*J, Lpad)

        # Single lane-dense, sublane-aligned store.
        out_ref[...] = y.astype(out_ref.dtype)

    return kernel


def _pick_block_batch(batch, frames, joints, max_rows=2048, max_out_rows=512):
    """Largest divisor Bt of `batch` whose (Bt*frames, C) input block and
    (Bt*joints, Lpad) output block are legal BlockSpecs (sublane-aligned
    unless Bt == batch), keeps the MXU M dim full but bounded, and keeps the
    per-step pooled-row count small."""
    best = None
    for d in range(1, batch + 1):
        if batch % d:
            continue
        if d != batch and ((d * frames) % 8 != 0 or (d * joints) % 8 != 0):
            continue
        if d * joints > max_out_rows:
            continue
        if d * frames <= max_rows or best is None:
            best = d
    return best if best is not None else batch


def joint_feat_extractor(x, mask, conv_ws, conv_bs, latent_w, latent_b,
                         num_joints, block_batch=None, eps=1e-5):
    """x: (B, T, C_in), mask: (B, num_joints, T // num_joints).
    Returns (B, latent_dim, num_joints), matching the PyTorch module."""
    B, T, C_in = x.shape
    J = num_joints
    assert T % J == 0, "T must be a multiple of num_joints"
    Fp = T // J
    assert mask.shape == (B, J, Fp)

    L = len(conv_ws)
    latent_dim = latent_w.shape[-1]
    Lpad = ((latent_dim + 127) // 128) * 128

    Bt = block_batch if block_batch is not None else _pick_block_batch(B, T, J)
    assert B % Bt == 0
    grid = (B // Bt,)

    # Inputs: x pre-flattened (free reshape in XLA) and pre-cast to bf16 (MXU
    # operand, halves x's HBM traffic); mask flattened to a single f32 column.
    x_flat = x.reshape(B * T, C_in).astype(jnp.bfloat16)
    m_col = mask.reshape(B * T, 1).astype(jnp.float32)

    # Grid-invariant block-diagonal segment matrix: row (b*J + j) selects the
    # Fp frames of joint j of batch element b (T == J*Fp => col//Fp == row).
    col = jnp.arange(Bt * T, dtype=jnp.int32)
    row = jnp.arange(Bt * J, dtype=jnp.int32)
    seg = (col[None, :] // Fp == row[:, None]).astype(jnp.float32)

    # Weights: first conv split into x-rows (bf16) and mask-row (f32, exact
    # since mask is 0/1); remaining convs bf16; latent conv zero-padded to
    # Lpad output lanes (lane-dense store). Biases stay f32.
    w0 = conv_ws[0]
    params = [w0[:C_in].astype(jnp.bfloat16),
              w0[C_in:C_in + 1].astype(jnp.float32),
              conv_bs[0].reshape(1, -1).astype(jnp.float32)]
    for i in range(1, L):
        params += [conv_ws[i].astype(jnp.bfloat16),
                   conv_bs[i].reshape(1, -1).astype(jnp.float32)]
    wl = jnp.pad(latent_w, ((0, 0), (0, Lpad - latent_dim))).astype(jnp.bfloat16)
    bl = jnp.pad(latent_b.reshape(1, -1),
                 ((0, 0), (0, Lpad - latent_dim))).astype(jnp.float32)
    params += [wl, bl]

    in_specs = [
        pl.BlockSpec((Bt * T, C_in), lambda b: (b, 0)),
        pl.BlockSpec((Bt * T, 1), lambda b: (b, 0)),
        pl.BlockSpec((Bt * J, Bt * T), lambda b: (0, 0)),  # grid-invariant
    ]
    for p in params:
        in_specs.append(pl.BlockSpec(p.shape, lambda b: (0, 0)))

    out = pl.pallas_call(
        make_kernel(L, J, eps),
        out_shape=jax.ShapeDtypeStruct((B * J, Lpad), jnp.float32),
        grid=grid,
        in_specs=in_specs,
        out_specs=pl.BlockSpec((Bt * J, Lpad), lambda b: (b, 0)),
        compiler_params=pltpu.CompilerParams(
            dimension_semantics=("parallel",),
            vmem_limit_bytes=32 * 1024 * 1024),
    )(x_flat, m_col, seg, *params)

    # Slice away the lane padding and return NCT like the PyTorch module.
    out = out.reshape(B, J, Lpad)[:, :, :latent_dim]
    return jnp.transpose(out, (0, 2, 1))


def reference(x, mask, conv_ws, conv_bs, latent_w, latent_b, num_joints,
              eps=1e-5):
    """Plain-JAX (f32) reproduction of the PyTorch forward for verification."""
    B, T, _ = x.shape
    J = num_joints
    Fp = T // J
    m_flat = mask.reshape(B, T, 1).astype(jnp.float32)
    h = jnp.concatenate([x.astype(jnp.float32), m_flat], axis=-1)
    for w, b in zip(conv_ws, conv_bs):
        h = jnp.einsum("btc,cd->btd", h, w) + b
        mean = h.mean(-1, keepdims=True)
        var = jnp.sum((h - mean) ** 2, -1, keepdims=True) / (h.shape[-1] - 1)
        h = jnp.maximum((h - mean) / jnp.sqrt(var + eps), 0.0)
    h = h.reshape(B, J, Fp, -1)
    pooled = (h * mask[..., None]).sum(2)                  # (B, J, C)
    ls = mask.sum(-1, keepdims=True)                       # (B, J, 1)
    zero = ls == 0
    denom = jnp.where(zero, 1.0, ls) + 1e-6
    pooled = jnp.where(zero, 0.0, pooled / denom)
    y = jnp.einsum("bjc,cd->bjd", pooled, latent_w) + latent_b
    return jnp.transpose(y, (0, 2, 1))


if __name__ == "__main__":
    key = jax.random.PRNGKey(0)
    B, T, C_in = 2, 8, 4
    num_joints, latent_dim = 4, 16
    Fp = T // num_joints
    conv_size = [C_in + 1, 32, 32]     # conv_size[0] = C_in + 1 (mask channel)

    keys = jax.random.split(key, 12)
    x = jax.random.normal(keys[0], (B, T, C_in), jnp.float32)
    mask = jax.random.bernoulli(keys[1], 0.7, (B, num_joints, Fp)).astype(jnp.float32)
    mask = mask.at[0, 1, :].set(0.0)   # exercise the fully-masked-joint branch

    conv_ws, conv_bs = [], []
    for i in range(len(conv_size) - 1):
        conv_ws.append(0.2 * jax.random.normal(
            keys[2 + 2 * i], (conv_size[i], conv_size[i + 1]), jnp.float32))
        conv_bs.append(0.1 * jax.random.normal(
            keys[3 + 2 * i], (conv_size[i + 1],), jnp.float32))
    latent_w = 0.2 * jax.random.normal(keys[8], (conv_size[-1], latent_dim), jnp.float32)
    latent_b = 0.1 * jax.random.normal(keys[9], (latent_dim,), jnp.float32)

    out = joint_feat_extractor(x, mask, conv_ws, conv_bs, latent_w, latent_b,
                               num_joints)
    out = jax.block_until_ready(out)

    ref = reference(x, mask, conv_ws, conv_bs, latent_w, latent_b, num_joints)
    assert out.shape == (B, latent_dim, num_joints), out.shape
    # Tolerance accounts for bf16 MXU operands (f32 accumulation); structural
    # errors would be O(1), far above this threshold.
    assert jnp.allclose(out, ref, atol=5e-2, rtol=5e-2), "kernel mismatch vs reference"
    print("KERNEL_OK")
</pallas_src>

<mosaic_0001>
module attributes {stable_mosaic.version = 11 : i64} {
  func.func @kernel(%arg0: i32, %arg1: memref<16x4xbf16, #tpu.memory_space<vmem>>, %arg2: memref<16x1xf32, #tpu.memory_space<vmem>>, %arg3: memref<8x16xf32, #tpu.memory_space<vmem>>, %arg4: memref<4x32xbf16, #tpu.memory_space<vmem>>, %arg5: memref<1x32xf32, #tpu.memory_space<vmem>>, %arg6: memref<1x32xf32, #tpu.memory_space<vmem>>, %arg7: memref<32x32xbf16, #tpu.memory_space<vmem>>, %arg8: memref<1x32xf32, #tpu.memory_space<vmem>>, %arg9: memref<32x128xbf16, #tpu.memory_space<vmem>>, %arg10: memref<1x128xf32, #tpu.memory_space<vmem>>, %arg11: memref<8x128xf32, #tpu.memory_space<vmem>>) attributes {dimension_semantics = [#tpu.dimension_semantics<parallel>], iteration_bounds = array<i64: 1>, scalar_prefetch = 0 : i64, scratch_operands = 0 : i64, tpu.core_type = #tpu.core_type<tc>, window_params = [{transform_indices = @transform_0, window_bounds = array<i64: 16, 4>}, {transform_indices = @transform_1, window_bounds = array<i64: 16, 1>}, {pipeline_mode = #tpu.pipeline_mode<synchronous>, transform_indices = @transform_2, window_bounds = array<i64: 8, 16>}, {pipeline_mode = #tpu.pipeline_mode<synchronous>, transform_indices = @transform_3, window_bounds = array<i64: 4, 32>}, {pipeline_mode = #tpu.pipeline_mode<synchronous>, transform_indices = @transform_4, window_bounds = array<i64: 1, 32>}, {pipeline_mode = #tpu.pipeline_mode<synchronous>, transform_indices = @transform_5, window_bounds = array<i64: 1, 32>}, {pipeline_mode = #tpu.pipeline_mode<synchronous>, transform_indices = @transform_6, window_bounds = array<i64: 32, 32>}, {pipeline_mode = #tpu.pipeline_mode<synchronous>, transform_indices = @transform_7, window_bounds = array<i64: 1, 32>}, {pipeline_mode = #tpu.pipeline_mode<synchronous>, transform_indices = @transform_8, window_bounds = array<i64: 32, 128>}, {pipeline_mode = #tpu.pipeline_mode<synchronous>, transform_indices = @transform_9, window_bounds = array<i64: 1, 128>}, {transform_indices = @transform_10, window_bounds = array<i64: 8, 128>}]} {
    %c0 = arith.constant 0 : index
    %c0_0 = arith.constant 0 : index
    %0 = vector.load %arg2[%c0, %c0_0] : memref<16x1xf32, #tpu.memory_space<vmem>>, vector<16x1xf32>
    %c0_1 = arith.constant 0 : index
    %c0_2 = arith.constant 0 : index
    %1 = vector.load %arg1[%c0_1, %c0_2] : memref<16x4xbf16, #tpu.memory_space<vmem>>, vector<16x4xbf16>
    %c0_3 = arith.constant 0 : index
    %c0_4 = arith.constant 0 : index
    %2 = vector.load %arg4[%c0_3, %c0_4] : memref<4x32xbf16, #tpu.memory_space<vmem>>, vector<4x32xbf16>
    %cst = arith.constant dense<0.000000e+00> : vector<16x32xf32>
    %3 = tpu.matmul %1, %2, %cst {dimension_numbers = #tpu.dot_dimension_numbers<[1], [0], [0], [1], [0, 0, 1, 1], [], []>} : vector<16x4xbf16>, vector<4x32xbf16>, vector<16x32xf32> -> vector<16x32xf32>
    %c0_5 = arith.constant 0 : index
    %c0_6 = arith.constant 0 : index
    %4 = vector.load %arg5[%c0_5, %c0_6] : memref<1x32xf32, #tpu.memory_space<vmem>>, vector<1x32xf32>
    %5 = vector.broadcast %0 : vector<16x1xf32> to vector<16x32xf32>
    %6 = vector.broadcast %4 : vector<1x32xf32> to vector<16x32xf32>
    %7 = arith.mulf %5, %6 : vector<16x32xf32>
    %8 = arith.addf %3, %7 : vector<16x32xf32>
    %c0_7 = arith.constant 0 : index
    %c0_8 = arith.constant 0 : index
    %9 = vector.load %arg6[%c0_7, %c0_8] : memref<1x32xf32, #tpu.memory_space<vmem>>, vector<1x32xf32>
    %10 = vector.broadcast %9 : vector<1x32xf32> to vector<16x32xf32>
    %11 = arith.addf %8, %10 : vector<16x32xf32>
    %cst_9 = arith.constant dense<0.000000e+00> : vector<16xf32>
    %12 = vector.multi_reduction <add>, %11, %cst_9 [1] : vector<16x32xf32> to vector<16xf32>
    %13 = vector.shape_cast %12 : vector<16xf32> to vector<16x1xf32>
    %cst_10 = arith.constant 3.200000e+01 : f32
    %14 = vector.broadcast %cst_10 : f32 to vector<16x1xf32>
    %15 = arith.divf %13, %14 : vector<16x1xf32>
    %16 = vector.broadcast %15 : vector<16x1xf32> to vector<16x32xf32>
    %17 = arith.subf %11, %16 : vector<16x32xf32>
    %18 = arith.mulf %17, %17 : vector<16x32xf32>
    %cst_11 = arith.constant dense<0.000000e+00> : vector<16xf32>
    %19 = vector.multi_reduction <add>, %18, %cst_11 [1] : vector<16x32xf32> to vector<16xf32>
    %20 = vector.shape_cast %19 : vector<16xf32> to vector<16x1xf32>
    %cst_12 = arith.constant 0.0322580636 : f32
    %21 = vector.broadcast %cst_12 : f32 to vector<16x1xf32>
    %22 = arith.mulf %20, %21 : vector<16x1xf32>
    %cst_13 = arith.constant 9.99999974E-6 : f32
    %23 = vector.broadcast %cst_13 : f32 to vector<16x1xf32>
    %24 = arith.addf %22, %23 : vector<16x1xf32>
    %25 = math.rsqrt %24 : vector<16x1xf32>
    %26 = vector.broadcast %25 : vector<16x1xf32> to vector<16x32xf32>
    %27 = arith.mulf %17, %26 : vector<16x32xf32>
    %cst_14 = arith.constant 0.000000e+00 : f32
    %28 = vector.broadcast %cst_14 : f32 to vector<16x32xf32>
    %29 = arith.maximumf %27, %28 : vector<16x32xf32>
    %c0_15 = arith.constant 0 : index
    %c0_16 = arith.constant 0 : index
    %30 = vector.load %arg7[%c0_15, %c0_16] : memref<32x32xbf16, #tpu.memory_space<vmem>>, vector<32x32xbf16>
    %c0_17 = arith.constant 0 : index
    %c0_18 = arith.constant 0 : index
    %31 = vector.load %arg8[%c0_17, %c0_18] : memref<1x32xf32, #tpu.memory_space<vmem>>, vector<1x32xf32>
    %32 = arith.truncf %29 : vector<16x32xf32> to vector<16x32xbf16>
    %cst_19 = arith.constant dense<0.000000e+00> : vector<16x32xf32>
    %33 = tpu.matmul %32, %30, %cst_19 {dimension_numbers = #tpu.dot_dimension_numbers<[1], [0], [0], [1], [0, 0, 1, 1], [], []>} : vector<16x32xbf16>, vector<32x32xbf16>, vector<16x32xf32> -> vector<16x32xf32>
    %34 = vector.broadcast %31 : vector<1x32xf32> to vector<16x32xf32>
    %35 = arith.addf %33, %34 : vector<16x32xf32>
    %cst_20 = arith.constant dense<0.000000e+00> : vector<16xf32>
    %36 = vector.multi_reduction <add>, %35, %cst_20 [1] : vector<16x32xf32> to vector<16xf32>
    %37 = vector.shape_cast %36 : vector<16xf32> to vector<16x1xf32>
    %cst_21 = arith.constant 3.200000e+01 : f32
    %38 = vector.broadcast %cst_21 : f32 to vector<16x1xf32>
    %39 = arith.divf %37, %38 : vector<16x1xf32>
    %40 = vector.broadcast %39 : vector<16x1xf32> to vector<16x32xf32>
    %41 = arith.subf %35, %40 : vector<16x32xf32>
    %42 = arith.mulf %41, %41 : vector<16x32xf32>
    %cst_22 = arith.constant dense<0.000000e+00> : vector<16xf32>
    %43 = vector.multi_reduction <add>, %42, %cst_22 [1] : vector<16x32xf32> to vector<16xf32>
    %44 = vector.shape_cast %43 : vector<16xf32> to vector<16x1xf32>
    %cst_23 = arith.constant 0.0322580636 : f32
    %45 = vector.broadcast %cst_23 : f32 to vector<16x1xf32>
    %46 = arith.mulf %44, %45 : vector<16x1xf32>
    %cst_24 = arith.constant 9.99999974E-6 : f32
    %47 = vector.broadcast %cst_24 : f32 to vector<16x1xf32>
    %48 = arith.addf %46, %47 : vector<16x1xf32>
    %49 = math.rsqrt %48 : vector<16x1xf32>
    %50 = vector.broadcast %49 : vector<16x1xf32> to vector<16x32xf32>
    %51 = arith.mulf %41, %50 : vector<16x32xf32>
    %cst_25 = arith.constant 0.000000e+00 : f32
    %52 = vector.broadcast %cst_25 : f32 to vector<16x32xf32>
    %53 = arith.maximumf %51, %52 : vector<16x32xf32>
    %c0_26 = arith.constant 0 : index
    %c0_27 = arith.constant 0 : index
    %54 = vector.load %arg3[%c0_26, %c0_27] : memref<8x16xf32, #tpu.memory_space<vmem>>, vector<8x16xf32>
    %55 = vector.broadcast %0 : vector<16x1xf32> to vector<16x32xf32>
    %56 = arith.mulf %53, %55 : vector<16x32xf32>
    %cst_28 = arith.constant dense<0.000000e+00> : vector<8x32xf32>
    %57 = tpu.matmul %54, %56, %cst_28 {dimension_numbers = #tpu.dot_dimension_numbers<[1], [0], [0], [1], [0, 0, 1, 1], [], []>} : vector<8x16xf32>, vector<16x32xf32>, vector<8x32xf32> -> vector<8x32xf32>
    %cst_29 = arith.constant dense<0.000000e+00> : vector<8x1xf32>
    %58 = tpu.matmul %54, %0, %cst_29 {dimension_numbers = #tpu.dot_dimension_numbers<[1], [0], [0], [1], [0, 0, 1, 1], [], []>} : vector<8x16xf32>, vector<16x1xf32>, vector<8x1xf32> -> vector<8x1xf32>
    %cst_30 = arith.constant 0.000000e+00 : f32
    %59 = vector.broadcast %cst_30 : f32 to vector<8x1xf32>
    %60 = arith.cmpf oeq, %58, %59 : vector<8x1xf32>
    %cst_31 = arith.constant 1.000000e+00 : f32
    %61 = vector.broadcast %cst_31 : f32 to vector<8x1xf32>
    %62 = arith.select %60, %61, %58 : vector<8x1xi1>, vector<8x1xf32>
    %cst_32 = arith.constant 9.99999997E-7 : f32
    %63 = vector.broadcast %cst_32 : f32 to vector<8x1xf32>
    %64 = arith.addf %62, %63 : vector<8x1xf32>
    %65 = tpu.reciprocal %64 {approx = true} : vector<8x1xf32> -> vector<8x1xf32>
    %66 = vector.broadcast %65 : vector<8x1xf32> to vector<8x32xf32>
    %67 = arith.mulf %57, %66 : vector<8x32xf32>
    %cst_33 = arith.constant 0.000000e+00 : f32
    %68 = vector.shape_cast %60 : vector<8x1xi1> to vector<8x1xi1>
    %69 = vector.broadcast %68 : vector<8x1xi1> to vector<8x32xi1>
    %70 = vector.broadcast %cst_33 : f32 to vector<8x32xf32>
    %71 = arith.select %69, %70, %67 : vector<8x32xi1>, vector<8x32xf32>
    %c0_34 = arith.constant 0 : index
    %c0_35 = arith.constant 0 : index
    %72 = vector.load %arg9[%c0_34, %c0_35] : memref<32x128xbf16, #tpu.memory_space<vmem>>, vector<32x128xbf16>
    %c0_36 = arith.constant 0 : index
    %c0_37 = arith.constant 0 : index
    %73 = vector.load %arg10[%c0_36, %c0_37] : memref<1x128xf32, #tpu.memory_space<vmem>>, vector<1x128xf32>
    %74 = arith.truncf %71 : vector<8x32xf32> to vector<8x32xbf16>
    %cst_38 = arith.constant dense<0.000000e+00> : vector<8x128xf32>
    %75 = tpu.matmul %74, %72, %cst_38 {dimension_numbers = #tpu.dot_dimension_numbers<[1], [0], [0], [1], [0, 0, 1, 1], [], []>} : vector<8x32xbf16>, vector<32x128xbf16>, vector<8x128xf32> -> vector<8x128xf32>
    %76 = vector.broadcast %73 : vector<1x128xf32> to vector<8x128xf32>
    %77 = arith.addf %75, %76 : vector<8x128xf32>
    %c0_39 = arith.constant 0 : index
    %c0_40 = arith.constant 0 : index
    %78 = vector.load %arg11[%c0_39, %c0_40] : memref<8x128xf32, #tpu.memory_space<vmem>>, vector<8x128xf32>
    tpu.vector_store %arg11[%c0_39, %c0_40], %77 {strides = array<i32>} : memref<8x128xf32, #tpu.memory_space<vmem>>, vector<8x128xf32>,
    return
  }
  func.func @transform_0(%arg0: i32) -> (i32, i32) {
    %c0_i32 = arith.constant 0 : i32
    %c0_i32_0 = arith.constant 0 : i32
    return %arg0, %c0_i32 : i32, i32
  }
  func.func @transform_1(%arg0: i32) -> (i32, i32) {
    %c0_i32 = arith.constant 0 : i32
    %c0_i32_0 = arith.constant 0 : i32
    return %arg0, %c0_i32 : i32, i32
  }
  func.func @transform_2(%arg0: i32) -> (i32, i32) {
    %c0_i32 = arith.constant 0 : i32
    %c0_i32_0 = arith.constant 0 : i32
    %c0_i32_1 = arith.constant 0 : i32
    return %c0_i32, %c0_i32_0 : i32, i32
  }
  func.func @transform_3(%arg0: i32) -> (i32, i32) {
    %c0_i32 = arith.constant 0 : i32
    %c0_i32_0 = arith.constant 0 : i32
    %c0_i32_1 = arith.constant 0 : i32
    return %c0_i32, %c0_i32_0 : i32, i32
  }
  func.func @transform_4(%arg0: i32) -> (i32, i32) {
    %c0_i32 = arith.constant 0 : i32
    %c0_i32_0 = arith.constant 0 : i32
    %c0_i32_1 = arith.constant 0 : i32
    return %c0_i32, %c0_i32_0 : i32, i32
  }
  func.func @transform_5(%arg0: i32) -> (i32, i32) {
    %c0_i32 = arith.constant 0 : i32
    %c0_i32_0 = arith.constant 0 : i32
    %c0_i32_1 = arith.constant 0 : i32
    return %c0_i32, %c0_i32_0 : i32, i32
  }
  func.func @transform_6(%arg0: i32) -> (i32, i32) {
    %c0_i32 = arith.constant 0 : i32
    %c0_i32_0 = arith.constant 0 : i32
    %c0_i32_1 = arith.constant 0 : i32
    return %c0_i32, %c0_i32_0 : i32, i32
  }
  func.func @transform_7(%arg0: i32) -> (i32, i32) {
    %c0_i32 = arith.constant 0 : i32
    %c0_i32_0 = arith.constant 0 : i32
    %c0_i32_1 = arith.constant 0 : i32
    return %c0_i32, %c0_i32_0 : i32, i32
  }
  func.func @transform_8(%arg0: i32) -> (i32, i32) {
    %c0_i32 = arith.constant 0 : i32
    %c0_i32_0 = arith.constant 0 : i32
    %c0_i32_1 = arith.constant 0 : i32
    return %c0_i32, %c0_i32_0 : i32, i32
  }
  func.func @transform_9(%arg0: i32) -> (i32, i32) {
    %c0_i32 = arith.constant 0 : i32
    %c0_i32_0 = arith.constant 0 : i32
    %c0_i32_1 = arith.constant 0 : i32
    return %c0_i32, %c0_i32_0 : i32, i32
  }
  func.func @transform_10(%arg0: i32) -> (i32, i32) {
    %c0_i32 = arith.constant 0 : i32
    %c0_i32_0 = arith.constant 0 : i32
    return %arg0, %c0_i32 : i32, i32
  }
}

</mosaic_0001>

<llo_original>
// kernel: tpu_custom_call.1
$region0: #{tpu_custom_call.1}
  #allocation0 [shape = 'u32[]', space=smem, size = 0x4, offset = 0x4, fixed_abs, tag = 'smem constant byte address 0x4 - core index']
  #allocation1 [shape = 'u32[144,128]{1,0:T(1,128)}', space=vmem, size = 0x12000, scoped, tag = 'internal scratch']
  %s0 = inlined_call_operand.vmem [shape: bf16[16,4], index: 0, kind: input, shape index: {}]
  %s1 = inlined_call_operand.vmem [shape: f32[16,1], index: 1, kind: input, shape index: {}]
  %s2 = inlined_call_operand.hbm [shape: f32[8,16], index: 2, kind: input, shape index: {}]
  %s3 = inlined_call_operand.vmem [shape: bf16[4,32], index: 3, kind: input, shape index: {}]
  %s4 = inlined_call_operand.vmem [shape: f32[1,32], index: 4, kind: input, shape index: {}]
  %s5 = inlined_call_operand.vmem [shape: f32[1,32], index: 5, kind: input, shape index: {}]
  %s6 = inlined_call_operand.vmem [shape: bf16[32,32], index: 6, kind: input, shape index: {}]
  %s7 = inlined_call_operand.vmem [shape: f32[1,32], index: 7, kind: input, shape index: {}]
  %s8 = inlined_call_operand.vmem [shape: bf16[32,128], index: 8, kind: input, shape index: {}]
  %s9 = inlined_call_operand.vmem [shape: f32[1,128], index: 9, kind: input, shape index: {}]
  %s10 = inlined_call_operand.hbm [shape: f32[8,128], index: 10, kind: output, shape index: {}]
  %s11 = sld [smem:[#allocation0]]
  $region54: #{tpu_custom_call.1} parent=0
    _
  %s13 = ssub.s32 1, %s11
  %s14 = scalar_select 0, %s13, %s11
  $region1: #{tpu_custom_call.1} parent=0
    #allocation2 [shape = 'u8[4096]{0}', space=vmem, size = 0x1000, scoped, tag = 'input window, operand 2, single buffered']
    #allocation3 [shape = 's32[1]{0}', space=sflag, size = 0x4, scoped, tag = 'scoped memory for tpu_custom_call.1']
    #allocation4 [shape = 's32[1]{0}', space=sflag, size = 0x4, scoped, tag = 'scoped memory for tpu_custom_call.1']
    #allocation5 [shape = 'u8[4096]{0}', space=vmem, size = 0x1000, scoped, tag = 'output window, operand 0, single buffered']
    %15 = vsyncpa [#allocation3], 0
    %16 = vsyncpa [#allocation4], 0
    // Predicated region
    $region2: #{tpu_custom_call.1} parent=1 // pred_check
      _
    $region3: #{tpu_custom_call.1} parent=1 // pred_check_branch
      %18 = sbr.rel (0) target = $region5
    $region4: #{tpu_custom_call.1} parent=1 // pred_region
      _
    $region5: #{tpu_custom_call.1} parent=1 // pred_fallthru
      _
    // Predicated region
    $region6: #{tpu_custom_call.1} parent=1 // pred_check
      _
    $region7: #{tpu_custom_call.1} parent=1 // pred_check_branch
      %20 = sbr.rel (0) target = $region9
    $region8: #{tpu_custom_call.1} parent=1 // pred_region
      _
    $region9: #{tpu_custom_call.1} parent=1 // pred_fallthru
      _
    // Predicated region
    $region10: #{tpu_custom_call.1} parent=1 // pred_check
      _
    $region11: #{tpu_custom_call.1} parent=1 // pred_check_branch
      %22 = sbr.rel (0) target = $region13
    $region12: #{tpu_custom_call.1} parent=1 // pred_region
      %s24 = ssub.s32 128, 128
      %25 = vsyncadd [#allocation3], %s24
      %s27 = sshll.u32 [#allocation2], 4
      %s28 = int_to_ptr.vmem [resolvable:$true] %s27
      %30 = dma.hbm_to_vmem [thread:$0]  %s2, 128, %s28, [#allocation3]
    $region13: #{tpu_custom_call.1} parent=1 // pred_fallthru
      _
    // Predicated region
    $region14: #{tpu_custom_call.1} parent=1 // pred_check
      _
    $region15: #{tpu_custom_call.1} parent=1 // pred_check_branch
      %32 = sbr.rel (0) target = $region17
    $region16: #{tpu_custom_call.1} parent=1 // pred_region
      _
    $region17: #{tpu_custom_call.1} parent=1 // pred_fallthru
      _
    // Predicated region
    $region18: #{tpu_custom_call.1} parent=1 // pred_check
      _
    $region19: #{tpu_custom_call.1} parent=1 // pred_check_branch
      %34 = sbr.rel (0) target = $region21
    $region20: #{tpu_custom_call.1} parent=1 // pred_region
      _
    $region21: #{tpu_custom_call.1} parent=1 // pred_fallthru
      _
    // Predicated region
    $region22: #{tpu_custom_call.1} parent=1 // pred_check
      _
    $region23: #{tpu_custom_call.1} parent=1 // pred_check_branch
      %36 = sbr.rel (0) target = $region25
    $region24: #{tpu_custom_call.1} parent=1 // pred_region
      _
    $region25: #{tpu_custom_call.1} parent=1 // pred_fallthru
      _
    // Predicated region
    $region26: #{tpu_custom_call.1} parent=1 // pred_check
      _
    $region27: #{tpu_custom_call.1} parent=1 // pred_check_branch
      %38 = sbr.rel (0) target = $region29
    $region28: #{tpu_custom_call.1} parent=1 // pred_region
      _
    $region29: #{tpu_custom_call.1} parent=1 // pred_fallthru
      _
    // Predicated region
    $region30: #{tpu_custom_call.1} parent=1 // pred_check
      _
    $region31: #{tpu_custom_call.1} parent=1 // pred_check_branch
      %40 = sbr.rel (0) target = $region33
    $region32: #{tpu_custom_call.1} parent=1 // pred_region
      _
    $region33: #{tpu_custom_call.1} parent=1 // pred_fallthru
      _
    // Predicated region
    $region34: #{tpu_custom_call.1} parent=1 // pred_check
      _
    $region35: #{tpu_custom_call.1} parent=1 // pred_check_branch
      %42 = sbr.rel (0) target = $region37
    $region36: #{tpu_custom_call.1} parent=1 // pred_region
      _
    $region37: #{tpu_custom_call.1} parent=1 // pred_fallthru
      _
    // Predicated region
    $region38: #{tpu_custom_call.1} parent=1 // pred_check
      _
    $region39: #{tpu_custom_call.1} parent=1 // pred_check_branch
      %44 = sbr.rel (0) target = $region41
    $region40: #{tpu_custom_call.1} parent=1 // pred_region
      _
    $region41: #{tpu_custom_call.1} parent=1 // pred_fallthru
      _
    // Predicated region
    $region42: #{tpu_custom_call.1} parent=1 // pred_check
      _
    $region43: #{tpu_custom_call.1} parent=1 // pred_check_branch
      %46 = sbr.rel (0) target = $region45
    $region44: #{tpu_custom_call.1} parent=1 // pred_region
      %47 = dma.done [#allocation3], 128
    $region45: #{tpu_custom_call.1} parent=1 // pred_fallthru
      _
    %v49 = vld [vmem:[%s1] sm:$0xff]
    %v50 = vld [vmem:[%s1 + $0x8] sm:$0xff]
    %v51 = vld [vmem:[%s0] sm:$0xf]
    %v52 = vld [vmem:[%s0 + $0x4] sm:$0xf]
    %v53 = vld [vmem:[%s3] sm:$0x3]
    %v54 = vld [vmem:[%s4] sm:$0x1]
    %56 = vset.pattern.permute.xlu0 0
    %57 = vperm.xlu0 %56, %v49
    %v58 = vpop.permute.xlu0 %57
    %61 = vset.pattern.permute.xlu0 0
    %62 = vperm.xlu0 %61, %v50
    %v63 = vpop.permute.xlu0 %62
    %v66 = vlaneseq
    %v67 = vshrl.u32 %v66, 7
    %v68 = vsub.s32 0, %v67
    %v69 = vrot.slane %v54, %v68
    %v71 = vmul.f32 %v58, %v69
    %v72 = vmul.f32 %v63, %v69
    %v75 = vunpack.c.l.b16 %v51
    %v76 = vunpack.c.l.b16 %v52
    %v77 = vpack.c.b16 %v76, %v75
    %vm78 = vcmask 31744
    %v80 = vsel %vm78, %v77, 0
    %vm82 = vcmask 1041408
    %v84 = vsel %vm82, %v53, 0
    %86 = vmatprep.subr.bf16.mxu0 0
    %87 = vmatpush1.bf16.msra.mxu0 %v84
    %88 = vmatprep.subr.bf16.mxu0 0
    %89 = vmatpush1.bf16.msra.mxu0 0
    %90 = vmatprep.subr.bf16.mxu0 0
    %91 = vmatpush1.bf16.msra.mxu0 0
    %92 = vmatprep.subr.bf16.mxu0 0
    %93 = vmatpush1.bf16.msra.mxu0 0
    %94 = vmatprep.subr.bf16.mxu0 0
    %95 = vmatpush1.bf16.msra.mxu0 0
    %96 = vmatprep.subr.bf16.mxu0 0
    %97 = vmatpush1.bf16.msra.mxu0 0
    %98 = vmatprep.subr.bf16.mxu0 0
    %99 = vmatpush1.bf16.msra.mxu0 0
    %100 = vmatprep.subr.bf16.mxu0 0
    %101 = vmatpush1.bf16.msra.mxu0 0
    %102 = vmatprep.subr.bf16.mxu0 0
    %103 = vmatpush1.bf16.msra.mxu0 0
    %104 = vmatprep.subr.bf16.mxu0 0
    %105 = vmatpush1.bf16.msra.mxu0 0
    %106 = vmatprep.subr.bf16.mxu0 0
    %107 = vmatpush1.bf16.msra.mxu0 0
    %108 = vmatprep.subr.bf16.mxu0 0
    %109 = vmatpush1.bf16.msra.mxu0 0
    %110 = vmatprep.subr.bf16.mxu0 0
    %111 = vmatpush1.bf16.msra.mxu0 0
    %112 = vmatprep.subr.bf16.mxu0 0
    %113 = vmatpush1.bf16.msra.mxu0 0
    %114 = vmatprep.subr.bf16.mxu0 0
    %115 = vmatpush1.bf16.msra.mxu0 0
    %116 = vmatprep.subr.bf16.mxu0 0
    %117 = vmatpush1.bf16.msra.mxu0 0
    %118 = vmatprep.mubr.bf16.mxu0 0
    %119 = vmatmul.mubr.bf16.gmra.mrb[0].mxu0 %v80
    %v120 = vpop.f32.mrb[0].mxu0
    %v121 = vadd.f32 %v71, %v120
    %v122 = vpop.f32.mrb[0].mxu0
    %v123 = vpop.f32.mrb[0].mxu0
    %v124 = vadd.f32 %v72, %v123
    %v125 = vpop.f32.mrb[0].mxu0
    %126 = vdwg.mxu0
    %v127 = vld [vmem:[%s5] sm:$0x1]
    %v129 = vlaneseq
    %v130 = vshrl.u32 %v129, 7
    %v131 = vsub.s32 0, %v130
    %v132 = vrot.slane %v127, %v131
    %v134 = vadd.f32 %v121, %v132
    %v135 = vadd.f32 %v124, %v132
    %vm136 = vcmask 261120
    %v137 = vsel %vm136, %v134, 0.0
    %138 = vadd.xlane.f32.xlu0 %v137
    %v139 = vpop.xlane.xlu0 %138
    %v140 = vsel %vm136, %v135, 0.0
    %141 = vadd.xlane.f32.xlu0 %v140
    %v142 = vpop.xlane.xlu0 %141
    %v143 = vrcp.pop 32.0
    %v144 = vmul.f32 %v139, %v143
    %v145 = vmul.f32 %v142, %v143
    %v146 = vsub.f32 %v134, %v144
    %v147 = vsub.f32 %v135, %v145
    %v148 = vmul.f32 %v146, %v146
    %v149 = vmul.f32 %v147, %v147
    %v150 = vsel %vm136, %v148, 0.0
    %151 = vadd.xlane.f32.xlu0 %v150
    %v152 = vpop.xlane.xlu0 %151
    %v153 = vsel %vm136, %v149, 0.0
    %154 = vadd.xlane.f32.xlu0 %v153
    %v155 = vpop.xlane.xlu0 %154
    %v156 = vmul.f32 %v152, 0.032258064
    %v157 = vmul.f32 %v155, 0.032258064
    %v158 = vadd.f32 %v156, 1e-05
    %v159 = vadd.f32 %v157, 1e-05
    %v160 = vrsqrt.pop %v158
    %v161 = vrsqrt.pop %v159
    %v162 = vmul.f32 %v146, %v160
    %v163 = vmul.f32 %v147, %v161
    %v164 = vmax.f32 %v162, 0.0
    %v165 = vmax.f32 %v163, 0.0
    %v166 = vld [vmem:[%s6] sm:$0xf]
    %v167 = vld [vmem:[%s6 + $0x4] sm:$0xf]
    %v168 = vld [vmem:[%s6 + $0x8] sm:$0xf]
    %v169 = vld [vmem:[%s6 + $0xc] sm:$0xf]
    %v170 = vld [vmem:[%s7] sm:$0x1]
    %v171 = vpack.c.bf16 %v165, %v164
    %v173 = vlaneseq
    %v174 = vshrl.u32 %v173, 7
    %v175 = vsub.s32 0, %v174
    %v176 = vrot.slane %v170, %v175
    %v182 = vunpack.c.l.b16 %v166
    %v183 = vunpack.c.l.b16 %v167
    %v184 = vunpack.c.l.b16 %v168
    %v185 = vunpack.c.l.b16 %v169
    %v186 = vpack.c.b16 %v183, %v182
    %v187 = vpack.c.b16 %v185, %v184
    %v191 = vsel %vm136, %v171, 0
    %193 = vmatprep.subr.bf16.mxu0 0
    %194 = vmatpush1.bf16.msra.mxu0 %v186
    %195 = vmatprep.subr.bf16.mxu0 0
    %196 = vmatpush1.bf16.msra.mxu0 %v187
    %197 = vmatprep.subr.bf16.mxu0 0
    %198 = vmatpush1.bf16.msra.mxu0 0
    %199 = vmatprep.subr.bf16.mxu0 0
    %200 = vmatpush1.bf16.msra.mxu0 0
    %201 = vmatprep.subr.bf16.mxu0 0
    %202 = vmatpush1.bf16.msra.mxu0 0
    %203 = vmatprep.subr.bf16.mxu0 0
    %204 = vmatpush1.bf16.msra.mxu0 0
    %205 = vmatprep.subr.bf16.mxu0 0
    %206 = vmatpush1.bf16.msra.mxu0 0
    %207 = vmatprep.subr.bf16.mxu0 0
    %208 = vmatpush1.bf16.msra.mxu0 0
    %209 = vmatprep.subr.bf16.mxu0 0
    %210 = vmatpush1.bf16.msra.mxu0 0
    %211 = vmatprep.subr.bf16.mxu0 0
    %212 = vmatpush1.bf16.msra.mxu0 0
    %213 = vmatprep.subr.bf16.mxu0 0
    %214 = vmatpush1.bf16.msra.mxu0 0
    %215 = vmatprep.subr.bf16.mxu0 0
    %216 = vmatpush1.bf16.msra.mxu0 0
    %217 = vmatprep.subr.bf16.mxu0 0
    %218 = vmatpush1.bf16.msra.mxu0 0
    %219 = vmatprep.subr.bf16.mxu0 0
    %220 = vmatpush1.bf16.msra.mxu0 0
    %221 = vmatprep.subr.bf16.mxu0 0
    %222 = vmatpush1.bf16.msra.mxu0 0
    %223 = vmatprep.subr.bf16.mxu0 0
    %224 = vmatpush1.bf16.msra.mxu0 0
    %225 = vmatprep.mubr.bf16.mxu0 0
    %226 = vmatmul.mubr.bf16.gmra.mrb[0].mxu0 %v191
    %v227 = vpop.f32.mrb[0].mxu0
    %v228 = vadd.f32 %v176, %v227
    %v229 = vpop.f32.mrb[0].mxu0
    %v230 = vpop.f32.mrb[0].mxu0
    %v231 = vadd.f32 %v176, %v230
    %v232 = vpop.f32.mrb[0].mxu0
    %233 = vdwg.mxu0
    %v234 = vsel %vm136, %v228, 0.0
    %235 = vadd.xlane.f32.xlu0 %v234
    %v236 = vpop.xlane.xlu0 %235
    %v237 = vsel %vm136, %v231, 0.0
    %238 = vadd.xlane.f32.xlu0 %v237
    %v239 = vpop.xlane.xlu0 %238
    %v240 = vmul.f32 %v236, %v143
    %v241 = vmul.f32 %v239, %v143
    %v242 = vsub.f32 %v228, %v240
    %v243 = vsub.f32 %v231, %v241
    %v244 = vmul.f32 %v242, %v242
    %v245 = vmul.f32 %v243, %v243
    %v246 = vsel %vm136, %v244, 0.0
    %247 = vadd.xlane.f32.xlu0 %v246
    %v248 = vpop.xlane.xlu0 %247
    %v249 = vsel %vm136, %v245, 0.0
    %250 = vadd.xlane.f32.xlu0 %v249
    %v251 = vpop.xlane.xlu0 %250
    %v252 = vmul.f32 %v248, 0.032258064
    %v253 = vmul.f32 %v251, 0.032258064
    %v254 = vadd.f32 %v252, 1e-05
    %v255 = vadd.f32 %v253, 1e-05
    %v256 = vrsqrt.pop %v254
    %v257 = vrsqrt.pop %v255
    %v258 = vmul.f32 %v242, %v256
    %v259 = vmul.f32 %v243, %v257
    %v260 = vmax.f32 %v258, 0.0
    %v261 = vmax.f32 %v259, 0.0
    %v262 = vld [vmem:[#allocation2] sm:$0xff]
    %v263 = vmul.f32 %v260, %v58
    %v264 = vmul.f32 %v261, %v63
    %vm265 = vcmask 130048
    %v267 = vsel %vm265, %v262, 0
    %269 = vmatprep.subr.mxu0 0.0
    %270 = vmatpush1.msra.mxu0 %v263
    %271 = vmatprep.subr.mxu0 0.0
    %272 = vmatpush1.msra.mxu0 %v264
    %273 = vmatprep.subr.mxu0 0.0
    %274 = vmatpush1.msra.mxu0 0.0
    %275 = vmatprep.subr.mxu0 0.0
    %276 = vmatpush1.msra.mxu0 0.0
    %277 = vmatprep.subr.mxu0 0.0
    %278 = vmatpush1.msra.mxu0 0.0
    %279 = vmatprep.subr.mxu0 0.0
    %280 = vmatpush1.msra.mxu0 0.0
    %281 = vmatprep.subr.mxu0 0.0
    %282 = vmatpush1.msra.mxu0 0.0
    %283 = vmatprep.subr.mxu0 0.0
    %284 = vmatpush1.msra.mxu0 0.0
    %285 = vmatprep.subr.mxu0 0.0
    %286 = vmatpush1.msra.mxu0 0.0
    %287 = vmatprep.subr.mxu0 0.0
    %288 = vmatpush1.msra.mxu0 0.0
    %289 = vmatprep.subr.mxu0 0.0
    %290 = vmatpush1.msra.mxu0 0.0
    %291 = vmatprep.subr.mxu0 0.0
    %292 = vmatpush1.msra.mxu0 0.0
    %293 = vmatprep.subr.mxu0 0.0
    %294 = vmatpush1.msra.mxu0 0.0
    %295 = vmatprep.subr.mxu0 0.0
    %296 = vmatpush1.msra.mxu0 0.0
    %297 = vmatprep.subr.mxu0 0.0
    %298 = vmatpush1.msra.mxu0 0.0
    %299 = vmatprep.subr.mxu0 0.0
    %300 = vmatpush1.msra.mxu0 0.0
    %301 = vmatprep.subr.mxu0 0.0
    %302 = vmatpush1.msra.mxu0 0.0
    %303 = vmatprep.subr.mxu0 0.0
    %304 = vmatpush1.msra.mxu0 0.0
    %305 = vmatprep.subr.mxu0 0.0
    %306 = vmatpush1.msra.mxu0 0.0
    %307 = vmatprep.subr.mxu0 0.0
    %308 = vmatpush1.msra.mxu0 0.0
    %309 = vmatprep.subr.mxu0 0.0
    %310 = vmatpush1.msra.mxu0 0.0
    %311 = vmatprep.subr.mxu0 0.0
    %312 = vmatpush1.msra.mxu0 0.0
    %313 = vmatprep.subr.mxu0 0.0
    %314 = vmatpush1.msra.mxu0 0.0
    %315 = vmatprep.subr.mxu0 0.0
    %316 = vmatpush1.msra.mxu0 0.0
    %317 = vmatprep.subr.mxu0 0.0
    %318 = vmatpush1.msra.mxu0 0.0
    %319 = vmatprep.subr.mxu0 0.0
    %320 = vmatpush1.msra.mxu0 0.0
    %321 = vmatprep.subr.mxu0 0.0
    %322 = vmatpush1.msra.mxu0 0.0
    %323 = vmatprep.subr.mxu0 0.0
    %324 = vmatpush1.msra.mxu0 0.0
    %325 = vmatprep.subr.mxu0 0.0
    %326 = vmatpush1.msra.mxu0 0.0
    %327 = vmatprep.subr.mxu0 0.0
    %328 = vmatpush1.msra.mxu0 0.0
    %329 = vmatprep.subr.mxu0 0.0
    %330 = vmatpush1.msra.mxu0 0.0
    %331 = vmatprep.subr.mxu0 0.0
    %332 = vmatpush1.msra.mxu0 0.0
    %333 = vmatprep.mubr.f32.mxu0 0.0
    %334 = vmatmul.mubr.f32.gmra.mrb[0].mxu0 %v267
    %v335 = vpop.f32.mrb[0].mxu0
    %v336 = vadd.f32 0.0, %v335
    %v337 = vpop.f32.mrb[0].mxu0
    %338 = vdwg.mxu0
    %339 = vmatprep.subr.mxu0 0.0
    %340 = vmatpush1.msra.mxu0 %v49
    %341 = vmatprep.subr.mxu0 0.0
    %342 = vmatpush1.msra.mxu0 %v50
    %343 = vmatprep.subr.mxu0 0.0
    %344 = vmatpush1.msra.mxu0 0.0
    %345 = vmatprep.subr.mxu0 0.0
    %346 = vmatpush1.msra.mxu0 0.0
    %347 = vmatprep.subr.mxu0 0.0
    %348 = vmatpush1.msra.mxu0 0.0
    %349 = vmatprep.subr.mxu0 0.0
    %350 = vmatpush1.msra.mxu0 0.0
    %351 = vmatprep.subr.mxu0 0.0
    %352 = vmatpush1.msra.mxu0 0.0
    %353 = vmatprep.subr.mxu0 0.0
    %354 = vmatpush1.msra.mxu0 0.0
    %355 = vmatprep.subr.mxu0 0.0
    %356 = vmatpush1.msra.mxu0 0.0
    %357 = vmatprep.subr.mxu0 0.0
    %358 = vmatpush1.msra.mxu0 0.0
    %359 = vmatprep.subr.mxu0 0.0
    %360 = vmatpush1.msra.mxu0 0.0
    %361 = vmatprep.subr.mxu0 0.0
    %362 = vmatpush1.msra.mxu0 0.0
    %363 = vmatprep.subr.mxu0 0.0
    %364 = vmatpush1.msra.mxu0 0.0
    %365 = vmatprep.subr.mxu0 0.0
    %366 = vmatpush1.msra.mxu0 0.0
    %367 = vmatprep.subr.mxu0 0.0
    %368 = vmatpush1.msra.mxu0 0.0
    %369 = vmatprep.subr.mxu0 0.0
    %370 = vmatpush1.msra.mxu0 0.0
    %371 = vmatprep.subr.mxu0 0.0
    %372 = vmatpush1.msra.mxu0 0.0
    %373 = vmatprep.subr.mxu0 0.0
    %374 = vmatpush1.msra.mxu0 0.0
    %375 = vmatprep.subr.mxu0 0.0
    %376 = vmatpush1.msra.mxu0 0.0
    %377 = vmatprep.subr.mxu0 0.0
    %378 = vmatpush1.msra.mxu0 0.0
    %379 = vmatprep.subr.mxu0 0.0
    %380 = vmatpush1.msra.mxu0 0.0
    %381 = vmatprep.subr.mxu0 0.0
    %382 = vmatpush1.msra.mxu0 0.0
    %383 = vmatprep.subr.mxu0 0.0
    %384 = vmatpush1.msra.mxu0 0.0
    %385 = vmatprep.subr.mxu0 0.0
    %386 = vmatpush1.msra.mxu0 0.0
    %387 = vmatprep.subr.mxu0 0.0
    %388 = vmatpush1.msra.mxu0 0.0
    %389 = vmatprep.subr.mxu0 0.0
    %390 = vmatpush1.msra.mxu0 0.0
    %391 = vmatprep.subr.mxu0 0.0
    %392 = vmatpush1.msra.mxu0 0.0
    %393 = vmatprep.subr.mxu0 0.0
    %394 = vmatpush1.msra.mxu0 0.0
    %395 = vmatprep.subr.mxu0 0.0
    %396 = vmatpush1.msra.mxu0 0.0
    %397 = vmatprep.subr.mxu0 0.0
    %398 = vmatpush1.msra.mxu0 0.0
    %399 = vmatprep.subr.mxu0 0.0
    %400 = vmatpush1.msra.mxu0 0.0
    %401 = vmatprep.subr.mxu0 0.0
    %402 = vmatpush1.msra.mxu0 0.0
    %403 = vmatprep.mubr.f32.mxu0 0.0
    %404 = vmatmul.mubr.f32.gmra.mrb[0].mxu0 %v267
    %v405 = vpop.f32.mrb[0].mxu0
    %v406 = vadd.f32 0.0, %v405
    %v407 = vpop.f32.mrb[0].mxu0
    %408 = vdwg.mxu0
    %vm409 = vcmp.eq.f32.partialorder %v406, 0.0
    %v410 = vsel %vm409, 1.0, %v406
    %v411 = vadd.f32 %v410, 1e-06
    %v412 = vrcp.pop %v411
    %414 = vset.pattern.permute.xlu0 0
    %415 = vperm.xlu0 %414, %v412
    %v416 = vpop.permute.xlu0 %415
    %v418 = vmul.f32 %v336, %v416
    %v419 = vsel %vm409, 1, 0
    %420 = vset.pattern.permute.xlu0 0
    %421 = vperm.xlu0 %420, %v419
    %v422 = vpop.permute.xlu0 %421
    %vm423 = vcmp.eq.s32.totalorder %v422, 1
    %v424 = vsel %vm423, 0.0, %v418
    %v425 = vld [vmem:[%s8] sm:$0xf]
    %v426 = vld [vmem:[%s8 + $0x4] sm:$0xf]
    %v427 = vld [vmem:[%s8 + $0x8] sm:$0xf]
    %v428 = vld [vmem:[%s8 + $0xc] sm:$0xf]
    %v429 = vld [vmem:[%s9] sm:$0x1]
    %v430 = vpack.c.bf16 %v424, %v424
    %v432 = vlaneseq
    %v433 = vshrl.u32 %v432, 7
    %v434 = vsub.s32 0, %v433
    %v435 = vrot.slane %v429, %v434
    %v441 = vunpack.c.l.b16 %v425
    %v442 = vunpack.c.l.b16 %v426
    %v443 = vunpack.c.l.b16 %v427
    %v444 = vunpack.c.l.b16 %v428
    %v445 = vpack.c.b16 %v442, %v441
    %v446 = vpack.c.b16 %v444, %v443
    %v450 = vsel %vm136, %v430, 0
    %452 = vmatprep.subr.bf16.mxu0 0
    %453 = vmatpush1.bf16.msra.mxu0 %v445
    %454 = vmatprep.subr.bf16.mxu0 0
    %455 = vmatpush1.bf16.msra.mxu0 %v446
    %456 = vmatprep.subr.bf16.mxu0 0
    %457 = vmatpush1.bf16.msra.mxu0 0
    %458 = vmatprep.subr.bf16.mxu0 0
    %459 = vmatpush1.bf16.msra.mxu0 0
    %460 = vmatprep.subr.bf16.mxu0 0
    %461 = vmatpush1.bf16.msra.mxu0 0
    %462 = vmatprep.subr.bf16.mxu0 0
    %463 = vmatpush1.bf16.msra.mxu0 0
    %464 = vmatprep.subr.bf16.mxu0 0
    %465 = vmatpush1.bf16.msra.mxu0 0
    %466 = vmatprep.subr.bf16.mxu0 0
    %467 = vmatpush1.bf16.msra.mxu0 0
    %468 = vmatprep.subr.bf16.mxu0 0
    %469 = vmatpush1.bf16.msra.mxu0 0
    %470 = vmatprep.subr.bf16.mxu0 0
    %471 = vmatpush1.bf16.msra.mxu0 0
    %472 = vmatprep.subr.bf16.mxu0 0
    %473 = vmatpush1.bf16.msra.mxu0 0
    %474 = vmatprep.subr.bf16.mxu0 0
    %475 = vmatpush1.bf16.msra.mxu0 0
    %476 = vmatprep.subr.bf16.mxu0 0
    %477 = vmatpush1.bf16.msra.mxu0 0
    %478 = vmatprep.subr.bf16.mxu0 0
    %479 = vmatpush1.bf16.msra.mxu0 0
    %480 = vmatprep.subr.bf16.mxu0 0
    %481 = vmatpush1.bf16.msra.mxu0 0
    %482 = vmatprep.subr.bf16.mxu0 0
    %483 = vmatpush1.bf16.msra.mxu0 0
    %484 = vmatprep.mubr.bf16.mxu0 0
    %485 = vmatmul.mubr.bf16.gmra.mrb[0].mxu0 %v450
    %v486 = vpop.f32.mrb[0].mxu0
    %v487 = vadd.f32 %v435, %v486
    %v488 = vpop.f32.mrb[0].mxu0
    %v489 = vpop.f32.mrb[0].mxu0
    %v490 = vpop.f32.mrb[0].mxu0
    %491 = vdwg.mxu0
    %492 = vst [vmem:[#allocation5] sm:$0xff] %v487
    // Predicated region
    $region46: #{tpu_custom_call.1} parent=1 // pred_check
      _
    $region47: #{tpu_custom_call.1} parent=1 // pred_check_branch
      %494 = sbr.rel (0) target = $region49
    $region48: #{tpu_custom_call.1} parent=1 // pred_region
      %s496 = ssub.s32 128, 128
      %497 = vsyncadd [#allocation4], %s496
      %s499 = sshll.u32 [#allocation5], 4
      %s500 = int_to_ptr.vmem [resolvable:$true] %s499
      %502 = dma.vmem_to_hbm [thread:$0]  %s500, 128, %s10, [#allocation4]
    $region49: #{tpu_custom_call.1} parent=1 // pred_fallthru
      _
    // Predicated region
    $region50: #{tpu_custom_call.1} parent=1 // pred_check
      _
    $region51: #{tpu_custom_call.1} parent=1 // pred_check_branch
      %504 = sbr.rel (0) target = $region53
    $region52: #{tpu_custom_call.1} parent=1 // pred_region
      %505 = dma.done [#allocation4], 128
    $region53: #{tpu_custom_call.1} parent=1 // pred_fallthru
      _
    %506 = vsyncpa [#allocation3], 1
    %507 = vsyncpa [#allocation4], 1

</llo_original>
